<compile_context>
chip_gen: v5e
topology: v5e:2x2
jax: 0.10.0
libtpu: 0.0.40
codegen_flags: <defaults>
</compile_context>

<pallas_src>
import jax
import jax.numpy as jnp
from jax.experimental import pallas as pl
from jax.experimental.pallas import tpu as pltpu


def _round_up(v, m):
    return ((v + m - 1) // m) * m


def _clf_kernel(x_ref, w123_ref, b123_ref, w4_ref, b4_ref, o_ref):
    # Collapsed L1+L2+L3 (dropout == identity in eval mode), then tanh.
    xb = x_ref[...].astype(jnp.bfloat16)            # in-kernel cast: x is f32 in HBM
    h = jnp.dot(xb, w123_ref[...],
                preferred_element_type=jnp.float32) + b123_ref[...]
    h = jnp.tanh(h)

    # L4 (narrow N == out_dim), then tanh.
    z = jnp.dot(h.astype(jnp.bfloat16), w4_ref[...],
                preferred_element_type=jnp.float32) + b4_ref[...]
    z = jnp.tanh(z)

    # Numerically stable softmax over the real out_dim lanes only.
    m = jnp.max(z, axis=-1, keepdims=True)
    e = jnp.exp(z - m)
    s = jnp.sum(e, axis=-1, keepdims=True)
    # pl.reciprocal(..., approx=True) is cheaper but drifts ~1e-3; keep exact.
    o_ref[...] = (e * pl.reciprocal(s)).astype(o_ref.dtype)


def clf_net_v1_forward(x, params, *, tile_b=2048, min_grid_steps=2):
    """x: [B, D_in] float32.  params: dict of (Wi, bi), Wi [in, out], bi [1, out]."""
    B, d_in = x.shape
    w1, b1 = params["w1"], params["b1"]
    w2, b2 = params["w2"], params["b2"]
    w3, b3 = params["w3"], params["b3"]
    w4, b4 = params["w4"], params["b4"]
    out_dim = w4.shape[1]

    # Collapse the three consecutive linear layers (no nonlinearity between
    # them in eval mode).  Product in f32, single cast to bf16 for the MXU.
    w123 = (w1 @ w2 @ w3).astype(jnp.bfloat16)                       # [d_in, d3]
    b123 = ((b1 @ w2 + b2) @ w3 + b3).astype(jnp.float32)            # [1, d3]
    w4b = w4.astype(jnp.bfloat16)                                    # [d3, out_dim]
    b4f = b4.astype(jnp.float32)                                     # [1, out_dim]
    d3 = w123.shape[1]

    # Batch tile: big enough to amortize grid-step overhead, small enough to
    # leave >= min_grid_steps steps (keeps both v7x TensorCores busy), rounded
    # to a multiple of 16 for bf16 sublane packing.  Ragged B is handled by
    # Pallas partial edge blocks (no explicit padding).
    tb = min(tile_b, _round_up(pl.cdiv(B, min_grid_steps), 16))
    tb = max(tb, 16)
    grid = (pl.cdiv(B, tb),)

    def full(a):
        # whole-array block, resident in VMEM across all batch tiles
        return pl.BlockSpec(a.shape, lambda i: (0, 0))

    cost = pl.CostEstimate(
        flops=2 * B * (d_in * d3 + d3 * out_dim),
        transcendentals=B * (d3 + 2 * out_dim + 1),
        bytes_accessed=(x.size * 4 + B * out_dim * 4
                        + (w123.size + w4b.size) * 2
                        + (b123.size + b4f.size) * 4),
    )

    out = pl.pallas_call(
        _clf_kernel,
        out_shape=jax.ShapeDtypeStruct((B, out_dim), jnp.float32),
        grid_spec=pltpu.PrefetchScalarGridSpec(
            num_scalar_prefetch=0,
            grid=grid,
            in_specs=[
                pl.BlockSpec((tb, d_in), lambda i: (i, 0)),   # x tile (f32)
                full(w123), full(b123),
                full(w4b), full(b4f),
            ],
            out_specs=pl.BlockSpec((tb, out_dim), lambda i: (i, 0)),
        ),
        compiler_params=pltpu.CompilerParams(
            dimension_semantics=("parallel",)),
        cost_estimate=cost,
    )(x, w123, b123, w4b, b4f)

    return out


def init_params(key, inp_emb_dimension, layer_dimensions):
    """Deterministic init mimicking nn.Linear default: U(-1/sqrt(fan_in), 1/sqrt(fan_in))."""
    dims = [inp_emb_dimension] + list(layer_dimensions) + [2]
    params = {}
    for idx in range(4):
        fan_in, fan_out = dims[idx], dims[idx + 1]
        key, kw, kb = jax.random.split(key, 3)
        bound = 1.0 / jnp.sqrt(jnp.float32(fan_in))
        params[f"w{idx + 1}"] = jax.random.uniform(
            kw, (fan_in, fan_out), jnp.float32, -bound, bound)
        params[f"b{idx + 1}"] = jax.random.uniform(
            kb, (1, fan_out), jnp.float32, -bound, bound)
    return params


def reference_forward_collapsed_bf16(x, params):
    """Pure-JAX reference with the exact precision recipe of the kernel."""
    f32, bf = jnp.float32, jnp.bfloat16
    w123 = params["w1"] @ params["w2"] @ params["w3"]
    b123 = (params["b1"] @ params["w2"] + params["b2"]) @ params["w3"] + params["b3"]
    h = jnp.dot(x.astype(bf), w123.astype(bf), preferred_element_type=f32) + b123
    h = jnp.tanh(h)
    z = jnp.dot(h.astype(bf), params["w4"].astype(bf),
                preferred_element_type=f32) + params["b4"]
    z = jnp.tanh(z)
    return jax.nn.softmax(z, axis=-1)


def reference_forward_f32(x, params):
    """Full-f32 per-layer reference (loose check vs bf16 / collapsed numerics)."""
    h = x @ params["w1"] + params["b1"]
    h = h @ params["w2"] + params["b2"]
    h = jnp.tanh(h @ params["w3"] + params["b3"])
    h = jnp.tanh(h @ params["w4"] + params["b4"])
    return jax.nn.softmax(h, axis=-1)


if __name__ == "__main__":
    key = jax.random.PRNGKey(0)
    inp_emb_dimension = 32
    layer_dimensions = [64, 32, 16]
    B = 16

    key, kx, kp = jax.random.split(key, 3)
    x = jax.random.normal(kx, (B, inp_emb_dimension), jnp.float32)
    params = init_params(kp, inp_emb_dimension, layer_dimensions)

    out = clf_net_v1_forward(x, params)
    out = jax.block_until_ready(out)

    assert out.shape == (B, 2)
    ref_c = reference_forward_collapsed_bf16(x, params)
    ref_f = reference_forward_f32(x, params)
    assert jnp.allclose(out, ref_c, atol=1e-4, rtol=1e-4), "mismatch vs collapsed-bf16 reference"
    assert jnp.allclose(out, ref_f, atol=3e-2), "mismatch vs f32 per-layer reference"
    assert jnp.allclose(jnp.sum(out, axis=-1), 1.0, atol=1e-5), "softmax rows must sum to 1"

    print("KERNEL_OK")
</pallas_src>

<mosaic_0001>
module attributes {stable_mosaic.version = 11 : i64} {
  func.func @_clf_kernel(%arg0: i32, %arg1: memref<16x32xf32, #tpu.memory_space<vmem>>, %arg2: memref<32x16xbf16, #tpu.memory_space<vmem>>, %arg3: memref<1x16xf32, #tpu.memory_space<vmem>>, %arg4: memref<16x2xbf16, #tpu.memory_space<vmem>>, %arg5: memref<1x2xf32, #tpu.memory_space<vmem>>, %arg6: memref<16x2xf32, #tpu.memory_space<vmem>>) attributes {dimension_semantics = [#tpu.dimension_semantics<parallel>], iteration_bounds = array<i64: 1>, scalar_prefetch = 0 : i64, scratch_operands = 0 : i64, tpu.core_type = #tpu.core_type<tc>, window_params = [{transform_indices = @transform_0, window_bounds = array<i64: 16, 32>}, {pipeline_mode = #tpu.pipeline_mode<synchronous>, transform_indices = @transform_1, window_bounds = array<i64: 32, 16>}, {pipeline_mode = #tpu.pipeline_mode<synchronous>, transform_indices = @transform_2, window_bounds = array<i64: 1, 16>}, {pipeline_mode = #tpu.pipeline_mode<synchronous>, transform_indices = @transform_3, window_bounds = array<i64: 16, 2>}, {pipeline_mode = #tpu.pipeline_mode<synchronous>, transform_indices = @transform_4, window_bounds = array<i64: 1, 2>}, {transform_indices = @transform_5, window_bounds = array<i64: 16, 2>}]} {
    %c0 = arith.constant 0 : index
    %c0_0 = arith.constant 0 : index
    %0 = vector.load %arg1[%c0, %c0_0] : memref<16x32xf32, #tpu.memory_space<vmem>>, vector<16x32xf32>
    %1 = arith.truncf %0 : vector<16x32xf32> to vector<16x32xbf16>
    %c0_1 = arith.constant 0 : index
    %c0_2 = arith.constant 0 : index
    %2 = vector.load %arg2[%c0_1, %c0_2] : memref<32x16xbf16, #tpu.memory_space<vmem>>, vector<32x16xbf16>
    %cst = arith.constant dense<0.000000e+00> : vector<16x16xf32>
    %3 = tpu.matmul %1, %2, %cst {dimension_numbers = #tpu.dot_dimension_numbers<[1], [0], [0], [1], [0, 0, 1, 1], [], []>} : vector<16x32xbf16>, vector<32x16xbf16>, vector<16x16xf32> -> vector<16x16xf32>
    %c0_3 = arith.constant 0 : index
    %c0_4 = arith.constant 0 : index
    %4 = vector.load %arg3[%c0_3, %c0_4] : memref<1x16xf32, #tpu.memory_space<vmem>>, vector<1x16xf32>
    %5 = vector.broadcast %4 : vector<1x16xf32> to vector<16x16xf32>
    %6 = arith.addf %3, %5 : vector<16x16xf32>
    %7 = math.tanh %6 : vector<16x16xf32>
    %8 = arith.truncf %7 : vector<16x16xf32> to vector<16x16xbf16>
    %c0_5 = arith.constant 0 : index
    %c0_6 = arith.constant 0 : index
    %9 = vector.load %arg4[%c0_5, %c0_6] : memref<16x2xbf16, #tpu.memory_space<vmem>>, vector<16x2xbf16>
    %cst_7 = arith.constant dense<0.000000e+00> : vector<16x2xf32>
    %10 = tpu.matmul %8, %9, %cst_7 {dimension_numbers = #tpu.dot_dimension_numbers<[1], [0], [0], [1], [0, 0, 1, 1], [], []>} : vector<16x16xbf16>, vector<16x2xbf16>, vector<16x2xf32> -> vector<16x2xf32>
    %c0_8 = arith.constant 0 : index
    %c0_9 = arith.constant 0 : index
    %11 = vector.load %arg5[%c0_8, %c0_9] : memref<1x2xf32, #tpu.memory_space<vmem>>, vector<1x2xf32>
    %12 = vector.broadcast %11 : vector<1x2xf32> to vector<16x2xf32>
    %13 = arith.addf %10, %12 : vector<16x2xf32>
    %14 = math.tanh %13 : vector<16x2xf32>
    %cst_10 = arith.constant dense<0xFF800000> : vector<16xf32>
    %15 = vector.multi_reduction <maximumf>, %14, %cst_10 [1] : vector<16x2xf32> to vector<16xf32>
    %16 = vector.shape_cast %15 : vector<16xf32> to vector<16x1xf32>
    %17 = vector.broadcast %16 : vector<16x1xf32> to vector<16x2xf32>
    %18 = arith.subf %14, %17 : vector<16x2xf32>
    %19 = math.exp %18 : vector<16x2xf32>
    %cst_11 = arith.constant dense<0.000000e+00> : vector<16xf32>
    %20 = vector.multi_reduction <add>, %19, %cst_11 [1] : vector<16x2xf32> to vector<16xf32>
    %21 = vector.shape_cast %20 : vector<16xf32> to vector<16x1xf32>
    %22 = tpu.reciprocal %21 : vector<16x1xf32> -> vector<16x1xf32>
    %23 = vector.broadcast %22 : vector<16x1xf32> to vector<16x2xf32>
    %24 = arith.mulf %19, %23 : vector<16x2xf32>
    %c0_12 = arith.constant 0 : index
    %c0_13 = arith.constant 0 : index
    %25 = vector.load %arg6[%c0_12, %c0_13] : memref<16x2xf32, #tpu.memory_space<vmem>>, vector<16x2xf32>
    tpu.vector_store %arg6[%c0_12, %c0_13], %24 {strides = array<i32>} : memref<16x2xf32, #tpu.memory_space<vmem>>, vector<16x2xf32>,
    return
  }
  func.func @transform_0(%arg0: i32) -> (i32, i32) {
    %c0_i32 = arith.constant 0 : i32
    %c0_i32_0 = arith.constant 0 : i32
    return %arg0, %c0_i32 : i32, i32
  }
  func.func @transform_1(%arg0: i32) -> (i32, i32) {
    %c0_i32 = arith.constant 0 : i32
    %c0_i32_0 = arith.constant 0 : i32
    %c0_i32_1 = arith.constant 0 : i32
    return %c0_i32, %c0_i32_0 : i32, i32
  }
  func.func @transform_2(%arg0: i32) -> (i32, i32) {
    %c0_i32 = arith.constant 0 : i32
    %c0_i32_0 = arith.constant 0 : i32
    %c0_i32_1 = arith.constant 0 : i32
    return %c0_i32, %c0_i32_0 : i32, i32
  }
  func.func @transform_3(%arg0: i32) -> (i32, i32) {
    %c0_i32 = arith.constant 0 : i32
    %c0_i32_0 = arith.constant 0 : i32
    %c0_i32_1 = arith.constant 0 : i32
    return %c0_i32, %c0_i32_0 : i32, i32
  }
  func.func @transform_4(%arg0: i32) -> (i32, i32) {
    %c0_i32 = arith.constant 0 : i32
    %c0_i32_0 = arith.constant 0 : i32
    %c0_i32_1 = arith.constant 0 : i32
    return %c0_i32, %c0_i32_0 : i32, i32
  }
  func.func @transform_5(%arg0: i32) -> (i32, i32) {
    %c0_i32 = arith.constant 0 : i32
    %c0_i32_0 = arith.constant 0 : i32
    return %arg0, %c0_i32 : i32, i32
  }
}

</mosaic_0001>

<llo_original>
// kernel: tpu_custom_call.1
$region0: #{tpu_custom_call.1}
  #allocation0 [shape = 'u32[]', space=smem, size = 0x4, offset = 0x4, fixed_abs, tag = 'smem constant byte address 0x4 - core index']
  #allocation1 [shape = 'u32[72,128]{1,0:T(1,128)}', space=vmem, size = 0x9000, scoped, tag = 'internal scratch']
  %s0 = inlined_call_operand.vmem [shape: f32[16,32], index: 0, kind: input, shape index: {}]
  %s1 = inlined_call_operand.vmem [shape: bf16[32,16], index: 1, kind: input, shape index: {}]
  %s2 = inlined_call_operand.vmem [shape: f32[1,16], index: 2, kind: input, shape index: {}]
  %s3 = inlined_call_operand.vmem [shape: bf16[16,2], index: 3, kind: input, shape index: {}]
  %s4 = inlined_call_operand.vmem [shape: f32[1,2], index: 4, kind: input, shape index: {}]
  %s5 = inlined_call_operand.vmem [shape: f32[16,2], index: 5, kind: output, shape index: {}]
  %s6 = sld [smem:[#allocation0]]
  $region30: #{tpu_custom_call.1} parent=0
    _
  %s8 = ssub.s32 1, %s6
  %s9 = scalar_select 0, %s8, %s6
  // Predicated region
  $region2: #{tpu_custom_call.1} parent=0 // pred_check
    _
  $region3: #{tpu_custom_call.1} parent=0 // pred_check_branch
    %11 = sbr.rel (0) target = $region5
  $region4: #{tpu_custom_call.1} parent=0 // pred_region
    _
  $region5: #{tpu_custom_call.1} parent=0 // pred_fallthru
    _
  // Predicated region
  $region6: #{tpu_custom_call.1} parent=0 // pred_check
    _
  $region7: #{tpu_custom_call.1} parent=0 // pred_check_branch
    %13 = sbr.rel (0) target = $region9
  $region8: #{tpu_custom_call.1} parent=0 // pred_region
    _
  $region9: #{tpu_custom_call.1} parent=0 // pred_fallthru
    _
  // Predicated region
  $region10: #{tpu_custom_call.1} parent=0 // pred_check
    _
  $region11: #{tpu_custom_call.1} parent=0 // pred_check_branch
    %15 = sbr.rel (0) target = $region13
  $region12: #{tpu_custom_call.1} parent=0 // pred_region
    _
  $region13: #{tpu_custom_call.1} parent=0 // pred_fallthru
    _
  // Predicated region
  $region14: #{tpu_custom_call.1} parent=0 // pred_check
    _
  $region15: #{tpu_custom_call.1} parent=0 // pred_check_branch
    %17 = sbr.rel (0) target = $region17
  $region16: #{tpu_custom_call.1} parent=0 // pred_region
    _
  $region17: #{tpu_custom_call.1} parent=0 // pred_fallthru
    _
  // Predicated region
  $region18: #{tpu_custom_call.1} parent=0 // pred_check
    _
  $region19: #{tpu_custom_call.1} parent=0 // pred_check_branch
    %19 = sbr.rel (0) target = $region21
  $region20: #{tpu_custom_call.1} parent=0 // pred_region
    _
  $region21: #{tpu_custom_call.1} parent=0 // pred_fallthru
    _
  %v21 = vld [vmem:[%s0] sm:$0xff]
  %v22 = vld [vmem:[%s0 + $0x8] sm:$0xff]
  %v23 = vpack.c.bf16 %v22, %v21
  %v24 = vld [vmem:[%s1] sm:$0xf]
  %v25 = vld [vmem:[%s1 + $0x4] sm:$0xf]
  %v26 = vld [vmem:[%s1 + $0x8] sm:$0xf]
  %v27 = vld [vmem:[%s1 + $0xc] sm:$0xf]
  %v28 = vld [vmem:[%s2] sm:$0x1]
  %v30 = vperm.slane %v28, 0
  %v36 = vunpack.c.l.b16 %v24
  %v37 = vunpack.c.l.b16 %v25
  %v38 = vunpack.c.l.b16 %v26
  %v39 = vunpack.c.l.b16 %v27
  %v40 = vpack.c.b16 %v37, %v36
  %v41 = vpack.c.b16 %v39, %v38
  %vm44 = vcmask 261120
  %v46 = vsel %vm44, %v23, 0
  %48 = vmatpush.bf16.msra.mxu0 0
  %49 = vmatpush.bf16.msra.mxu0 0
  %50 = vmatpush.bf16.msra.mxu0 0
  %51 = vmatpush.bf16.msra.mxu0 0
  %52 = vmatpush.bf16.msra.mxu0 0
  %53 = vmatpush.bf16.msra.mxu0 0
  %54 = vmatpush.bf16.msra.mxu0 %v41
  %55 = vmatpush.bf16.msra.mxu0 %v40
  %56 = vmatmul.bf16.gmra.mxu0 %v46
  %v57 = vpop.f32.mrf.mxu0
  %v58 = vadd.f32 %v30, %v57
  %v59 = vpop.f32.mrf.mxu0
  %v60 = vadd.f32 %v30, %v59
  %61 = vdwg.mxu0
  %v62 = vtanh.pop %v58
  %v63 = vtanh.pop %v60
  %v64 = vpack.c.bf16 %v63, %v62
  %v65 = vld [vmem:[%s3] sm:$0xf]
  %v66 = vld [vmem:[%s3 + $0x4] sm:$0xf]
  %v67 = vld [vmem:[%s4] sm:$0x1]
  %v69 = vperm.slane %v67, 0
  %v73 = vunpack.c.l.b16 %v65
  %v74 = vunpack.c.l.b16 %v66
  %v75 = vpack.c.b16 %v74, %v73
  %vm77 = vcmask 130048
  %v79 = vsel %vm77, %v64, 0
  %81 = vmatpush.bf16.msra.mxu0 0
  %82 = vmatpush.bf16.msra.mxu0 0
  %83 = vmatpush.bf16.msra.mxu0 0
  %84 = vmatpush.bf16.msra.mxu0 0
  %85 = vmatpush.bf16.msra.mxu0 0
  %86 = vmatpush.bf16.msra.mxu0 0
  %87 = vmatpush.bf16.msra.mxu0 0
  %88 = vmatpush.bf16.msra.mxu0 %v75
  %89 = vmatmul.bf16.gmra.mxu0 %v79
  %v90 = vpop.f32.mrf.mxu0
  %v91 = vadd.f32 %v69, %v90
  %v92 = vpop.f32.mrf.mxu0
  %v93 = vadd.f32 %v69, %v92
  %94 = vdwg.mxu0
  %v95 = vtanh.pop %v91
  %v96 = vtanh.pop %v93
  %vm97 = vcmask 15360
  %v98 = vsel %vm97, %v95, -inf
  %99 = vmax.xlane.f32.xlu0 %v98
  %v100 = vpop.xlane.xlu0 %99
  %v101 = vsel %vm97, %v96, -inf
  %102 = vmax.xlane.f32.xlu0 %v101
  %v103 = vpop.xlane.xlu0 %102
  %v104 = vsub.f32 %v95, %v100
  %v105 = vsub.f32 %v96, %v103
  %v106 = vmul.f32 %v104, 1.442695
  %v107 = vpow.pop %v106
  %v108 = vmul.f32 %v105, 1.442695
  %v109 = vpow.pop %v108
  %v110 = vsel %vm97, %v107, 0.0
  %111 = vadd.xlane.f32.xlu0 %v110
  %v112 = vpop.xlane.xlu0 %111
  %v113 = vsel %vm97, %v109, 0.0
  %114 = vadd.xlane.f32.xlu0 %v113
  %v115 = vpop.xlane.xlu0 %114
  %v116 = vrcp.pop %v112
  %v117 = vmul.f32 %v112, %v116
  %v118 = vsub.f32 1.0, %v117
  %v119 = vmul.f32 %v116, %v118
  %v120 = vadd.f32 %v116, %v119
  %vm121 = vweird.f32 %v112
  %vm122 = vweird.f32 %v116
  %vm123 = vmor %vm121, %vm122
  %v124 = vsel %vm123, %v116, %v120
  %v125 = vand.u32 2147483647, %v112
  %vm126 = vcmp.eq.f32.partialorder %v125, 8.507059e+37
  %v127 = vand.u32 %v112, 2147483648
  %v128 = vor.u32 1.1754944e-38, %v127
  %v129 = vsel %vm126, %v128, %v124
  %v130 = vrcp.pop %v115
  %v131 = vmul.f32 %v115, %v130
  %v132 = vsub.f32 1.0, %v131
  %v133 = vmul.f32 %v130, %v132
  %v134 = vadd.f32 %v130, %v133
  %vm135 = vweird.f32 %v115
  %vm136 = vweird.f32 %v130
  %vm137 = vmor %vm135, %vm136
  %v138 = vsel %vm137, %v130, %v134
  %v139 = vand.u32 2147483647, %v115
  %vm140 = vcmp.eq.f32.partialorder %v139, 8.507059e+37
  %v141 = vand.u32 %v115, 2147483648
  %v142 = vor.u32 1.1754944e-38, %v141
  %v143 = vsel %vm140, %v142, %v138
  %v144 = vmul.f32 %v107, %v129
  %v145 = vmul.f32 %v109, %v143
  %146 = vst.msk [vmem:[%s5] sm:$0xff] %vm97, %v144
  %147 = vst.msk [vmem:[%s5 + $0x8] sm:$0xff] %vm97, %v145
  // Predicated region
  $region22: #{tpu_custom_call.1} parent=0 // pred_check
    _
  $region23: #{tpu_custom_call.1} parent=0 // pred_check_branch
    %149 = sbr.rel (0) target = $region25
  $region24: #{tpu_custom_call.1} parent=0 // pred_region
    _
  $region25: #{tpu_custom_call.1} parent=0 // pred_fallthru
    _
  // Predicated region
  $region26: #{tpu_custom_call.1} parent=0 // pred_check
    _
  $region27: #{tpu_custom_call.1} parent=0 // pred_check_branch
    %151 = sbr.rel (0) target = $region29
  $region28: #{tpu_custom_call.1} parent=0 // pred_region
    _
  $region29: #{tpu_custom_call.1} parent=0 // pred_fallthru
    _

</llo_original>
